<compile_context>
chip_gen: v7x
topology: tpu7x:2x2x1
jax: 0.10.0
libtpu: 0.0.40
codegen_flags: <defaults>
</compile_context>

<pallas_src>
import functools

import jax
import jax.numpy as jnp
from jax.experimental import pallas as pl
from jax.experimental.pallas import tpu as pltpu


def _lstm_kernel(xproj_ref, uh_ref, out_ref, hN_ref, cN_ref, h_sc, c_sc):
    """One grid step processes a chunk of T_chunk timesteps.

    xproj_ref: (T_chunk, B, 4H)  precomputed x_t @ Wx_f + b_f, gates [f,i,o,g]
    uh_ref:    (H, 4H)           fused recurrent weights
    out_ref:   (T_chunk, B, H)   hidden states for this chunk
    hN_ref/cN_ref: (B, H)        final state (written on the last chunk only)
    h_sc/c_sc: (B, H) VMEM       recurrent state carried across chunks
    """
    chunk = pl.program_id(0)
    H = uh_ref.shape[0]
    t_chunk = out_ref.shape[0]

    @pl.when(chunk == 0)
    def _():
        h_sc[...] = jnp.zeros_like(h_sc)
        c_sc[...] = jnp.zeros_like(c_sc)

    uh = uh_ref[...]  # (H, 4H) — load once, reused by every unrolled step

    def step(t, carry):
        h_p, c_p = carry
        # Single fused MXU matmul per step: (B,H) x (H,4H) -> (B,4H) = 128 lanes.
        pre = xproj_ref[t] + jnp.dot(h_p, uh,
                                     preferred_element_type=jnp.float32)
        gates = jax.nn.sigmoid(pre)        # all four gates use sigmoid (spec)
        f_t = gates[:, 0 * H:1 * H]
        i_t = gates[:, 1 * H:2 * H]
        o_t = gates[:, 2 * H:3 * H]
        g_t = gates[:, 3 * H:4 * H]
        c_t = f_t * c_p + i_t * g_t
        h_t = o_t * jnp.tanh(c_t)
        out_ref[t] = h_t
        return (h_t, c_t)

    h_fin, c_fin = jax.lax.fori_loop(
        0, t_chunk, step, (h_sc[...], c_sc[...]), unroll=True)

    h_sc[...] = h_fin
    c_sc[...] = c_fin

    @pl.when(chunk == pl.num_programs(0) - 1)
    def _():
        hN_ref[...] = h_fin
        cN_ref[...] = c_fin


@functools.partial(jax.jit, static_argnames=("t_chunk",))
def lstm_forward(x, Wx, Uh, bW, bU, *, t_chunk=8):
    """LSTM forward matching the reference PyTorch module.

    x:  (B, T, D) float32, batch-first.
    Wx: (4, D, H), Uh: (4, H, H), bW/bU: (4, H) — gate order [f, i, o, g].
    Returns (out (B, T, H), (hN (B,H), cN (B,H))).
    """
    B, T, D = x.shape
    H = Wx.shape[-1]

    # Fuse the four gate weights: gate g occupies columns g*H:(g+1)*H.
    Wx_f = jnp.transpose(Wx, (1, 0, 2)).reshape(D, 4 * H)    # (D, 4H)
    Uh_f = jnp.transpose(Uh, (1, 0, 2)).reshape(H, 4 * H)    # (H, 4H)
    b_f = (bW + bU).reshape(4 * H)                           # (4H,)

    # Hoisted time-parallel input projection: one (T*B, D) x (D, 4H) GEMM,
    # produced directly in time-major layout for the serial kernel.
    x_tm = jnp.transpose(x, (1, 0, 2))                       # (T, B, D)
    xproj = (jnp.dot(x_tm.reshape(T * B, D), Wx_f,
                     preferred_element_type=jnp.float32)
             + b_f).reshape(T, B, 4 * H)                     # (T, B, 4H)

    t_chunk = min(t_chunk, T)
    assert T % t_chunk == 0, "T must be a multiple of t_chunk"
    num_chunks = T // t_chunk                                # == 1 at test size

    out_tm, hN, cN = pl.pallas_call(
        _lstm_kernel,
        out_shape=(
            jax.ShapeDtypeStruct((T, B, H), jnp.float32),
            jax.ShapeDtypeStruct((B, H), jnp.float32),
            jax.ShapeDtypeStruct((B, H), jnp.float32),
        ),
        grid_spec=pltpu.PrefetchScalarGridSpec(
            num_scalar_prefetch=0,
            grid=(num_chunks,),
            in_specs=[
                pl.BlockSpec((t_chunk, B, 4 * H), lambda c: (c, 0, 0)),
                pl.BlockSpec((H, 4 * H), lambda c: (0, 0)),
            ],
            out_specs=[
                pl.BlockSpec((t_chunk, B, H), lambda c: (c, 0, 0)),
                pl.BlockSpec((B, H), lambda c: (0, 0)),
                pl.BlockSpec((B, H), lambda c: (0, 0)),
            ],
            scratch_shapes=[
                pltpu.VMEM((B, H), jnp.float32),
                pltpu.VMEM((B, H), jnp.float32),
            ],
        ),
        # The time recurrence is serial (h/c scratch carries across chunks):
        # the chunk axis must stay "arbitrary".
        compiler_params=pltpu.CompilerParams(
            dimension_semantics=("arbitrary",)),
    )(xproj, Uh_f)

    out = jnp.transpose(out_tm, (1, 0, 2))                   # (B, T, H)
    return out, (hN, cN)


def lstm_reference(x, Wx, Uh, bW, bU):
    """Pure-JAX reference mirroring the PyTorch loop (per-gate Linears)."""
    B, T, D = x.shape
    H = Wx.shape[-1]
    h = jnp.zeros((B, H), jnp.float32)
    c = jnp.zeros((B, H), jnp.float32)

    def step(carry, x_t):
        h, c = carry
        f = jax.nn.sigmoid(x_t @ Wx[0] + bW[0] + h @ Uh[0] + bU[0])
        i = jax.nn.sigmoid(x_t @ Wx[1] + bW[1] + h @ Uh[1] + bU[1])
        o = jax.nn.sigmoid(x_t @ Wx[2] + bW[2] + h @ Uh[2] + bU[2])
        g = jax.nn.sigmoid(x_t @ Wx[3] + bW[3] + h @ Uh[3] + bU[3])
        c = f * c + i * g
        h = o * jnp.tanh(c)
        return (h, c), h

    (h, c), outs = jax.lax.scan(step, (h, c), jnp.transpose(x, (1, 0, 2)))
    return jnp.transpose(outs, (1, 0, 2)), (h, c)


if __name__ == "__main__":
    B, T, D, H = 8, 8, 16, 32

    key = jax.random.PRNGKey(0)
    kx, kw, ku, kbw, kbu = jax.random.split(key, 5)

    # Deterministic synthetic parameters (gate order: f, i, o, g).
    bound_w = 1.0 / (D ** 0.5)
    bound_u = 1.0 / (H ** 0.5)
    Wx = jax.random.uniform(kw, (4, D, H), jnp.float32, -bound_w, bound_w)
    Uh = jax.random.uniform(ku, (4, H, H), jnp.float32, -bound_u, bound_u)
    bW = jax.random.uniform(kbw, (4, H), jnp.float32, -bound_w, bound_w)
    bU = jax.random.uniform(kbu, (4, H), jnp.float32, -bound_u, bound_u)

    x = jax.random.normal(kx, (B, T, D), jnp.float32)

    out, (hN, cN) = lstm_forward(x, Wx, Uh, bW, bU)
    jax.block_until_ready((out, hN, cN))

    ref_out, (ref_h, ref_c) = lstm_reference(x, Wx, Uh, bW, bU)
    assert out.shape == (B, T, H) and hN.shape == (B, H) and cN.shape == (B, H)
    assert jnp.allclose(out, ref_out, atol=1e-5, rtol=1e-5)
    assert jnp.allclose(hN, ref_h, atol=1e-5, rtol=1e-5)
    assert jnp.allclose(cN, ref_c, atol=1e-5, rtol=1e-5)
    assert jnp.allclose(out[:, -1, :], hN, atol=1e-6)

    print("KERNEL_OK")
</pallas_src>

<mosaic_0001>
module attributes {stable_mosaic.version = 11 : i64} {
  func.func @_lstm_kernel(%arg0: i32, %arg1: memref<8x8x128xf32, #tpu.memory_space<vmem>>, %arg2: memref<32x128xf32, #tpu.memory_space<vmem>>, %arg3: memref<8x8x32xf32, #tpu.memory_space<vmem>>, %arg4: memref<8x32xf32, #tpu.memory_space<vmem>>, %arg5: memref<8x32xf32, #tpu.memory_space<vmem>>, %arg6: memref<8x32xf32, #tpu.memory_space<vmem>>, %arg7: memref<8x32xf32, #tpu.memory_space<vmem>>) attributes {dimension_semantics = [#tpu.dimension_semantics<arbitrary>], iteration_bounds = array<i64: 1>, scalar_prefetch = 0 : i64, scratch_operands = 2 : i64, tpu.core_type = #tpu.core_type<tc>, window_params = [{transform_indices = @transform_0, window_bounds = array<i64: 8, 8, 128>}, {pipeline_mode = #tpu.pipeline_mode<synchronous>, transform_indices = @transform_1, window_bounds = array<i64: 32, 128>}, {transform_indices = @transform_2, window_bounds = array<i64: 8, 8, 32>}, {pipeline_mode = #tpu.pipeline_mode<synchronous>, transform_indices = @transform_3, window_bounds = array<i64: 8, 32>}, {pipeline_mode = #tpu.pipeline_mode<synchronous>, transform_indices = @transform_4, window_bounds = array<i64: 8, 32>}]} {
    %c0_i32 = arith.constant 0 : i32
    %0 = arith.cmpi eq, %arg0, %c0_i32 : i32
    %1 = arith.extui %0 : i1 to i32
    %c0_i32_0 = arith.constant 0 : i32
    %2 = arith.cmpi ne, %1, %c0_i32_0 : i32
    scf.if %2 {
      %cst_60 = arith.constant 0.000000e+00 : f32
      %195 = vector.broadcast %cst_60 : f32 to vector<8x32xf32>
      %c0_61 = arith.constant 0 : index
      %c0_62 = arith.constant 0 : index
      %196 = vector.load %arg6[%c0_61, %c0_62] : memref<8x32xf32, #tpu.memory_space<vmem>>, vector<8x32xf32>
      tpu.vector_store %arg6[%c0_61, %c0_62], %195 {strides = array<i32>} : memref<8x32xf32, #tpu.memory_space<vmem>>, vector<8x32xf32>,
      %cst_63 = arith.constant 0.000000e+00 : f32
      %197 = vector.broadcast %cst_63 : f32 to vector<8x32xf32>
      %c0_64 = arith.constant 0 : index
      %c0_65 = arith.constant 0 : index
      %198 = vector.load %arg7[%c0_64, %c0_65] : memref<8x32xf32, #tpu.memory_space<vmem>>, vector<8x32xf32>
      tpu.vector_store %arg7[%c0_64, %c0_65], %197 {strides = array<i32>} : memref<8x32xf32, #tpu.memory_space<vmem>>, vector<8x32xf32>,
    } else {
    }
    %c0 = arith.constant 0 : index
    %c0_1 = arith.constant 0 : index
    %3 = vector.load %arg2[%c0, %c0_1] : memref<32x128xf32, #tpu.memory_space<vmem>>, vector<32x128xf32>
    %c0_2 = arith.constant 0 : index
    %c0_3 = arith.constant 0 : index
    %4 = vector.load %arg6[%c0_2, %c0_3] : memref<8x32xf32, #tpu.memory_space<vmem>>, vector<8x32xf32>
    %c0_4 = arith.constant 0 : index
    %c0_5 = arith.constant 0 : index
    %5 = vector.load %arg7[%c0_4, %c0_5] : memref<8x32xf32, #tpu.memory_space<vmem>>, vector<8x32xf32>
    %c0_i32_6 = arith.constant 0 : i32
    %6 = arith.index_cast %c0_i32_6 : i32 to index
    %c0_7 = arith.constant 0 : index
    %c0_8 = arith.constant 0 : index
    %7 = vector.load %arg1[%6, %c0_7, %c0_8] : memref<8x8x128xf32, #tpu.memory_space<vmem>>, vector<1x8x128xf32>
    %8 = vector.shape_cast %7 : vector<1x8x128xf32> to vector<8x128xf32>
    %cst = arith.constant dense<0.000000e+00> : vector<8x128xf32>
    %9 = tpu.matmul %4, %3, %cst {dimension_numbers = #tpu.dot_dimension_numbers<[1], [0], [0], [1], [0, 0, 1, 1], [], []>} : vector<8x32xf32>, vector<32x128xf32>, vector<8x128xf32> -> vector<8x128xf32>
    %10 = arith.addf %8, %9 : vector<8x128xf32>
    %11 = arith.negf %10 : vector<8x128xf32>
    %12 = math.exp %11 : vector<8x128xf32>
    %cst_9 = arith.constant 1.000000e+00 : f32
    %13 = vector.broadcast %cst_9 : f32 to vector<8x128xf32>
    %14 = arith.addf %13, %12 : vector<8x128xf32>
    %15 = arith.divf %13, %14 : vector<8x128xf32>
    %16 = vector.extract_strided_slice %15 {offsets = [0, 0], sizes = [8, 32], strides = [1, 1]} : vector<8x128xf32> to vector<8x32xf32>
    %17 = vector.extract_strided_slice %15 {offsets = [0, 32], sizes = [8, 32], strides = [1, 1]} : vector<8x128xf32> to vector<8x32xf32>
    %18 = vector.extract_strided_slice %15 {offsets = [0, 64], sizes = [8, 32], strides = [1, 1]} : vector<8x128xf32> to vector<8x32xf32>
    %19 = vector.extract_strided_slice %15 {offsets = [0, 96], sizes = [8, 32], strides = [1, 1]} : vector<8x128xf32> to vector<8x32xf32>
    %20 = arith.mulf %16, %5 : vector<8x32xf32>
    %21 = arith.mulf %17, %19 : vector<8x32xf32>
    %22 = arith.addf %20, %21 : vector<8x32xf32>
    %23 = math.tanh %22 : vector<8x32xf32>
    %24 = arith.mulf %18, %23 : vector<8x32xf32>
    %25 = arith.index_cast %c0_i32_6 : i32 to index
    %c0_10 = arith.constant 0 : index
    %c0_11 = arith.constant 0 : index
    %26 = vector.load %arg3[%25, %c0_10, %c0_11] : memref<8x8x32xf32, #tpu.memory_space<vmem>>, vector<1x8x32xf32>
    %27 = vector.shape_cast %26 : vector<1x8x32xf32> to vector<8x32xf32>
    %28 = vector.shape_cast %24 : vector<8x32xf32> to vector<1x8x32xf32>
    tpu.vector_store %arg3[%25, %c0_10, %c0_11], %28 {strides = array<i32>} : memref<8x8x32xf32, #tpu.memory_space<vmem>>, vector<1x8x32xf32>,
    %c1_i32 = arith.constant 1 : i32
    %29 = arith.index_cast %c1_i32 : i32 to index
    %c0_12 = arith.constant 0 : index
    %c0_13 = arith.constant 0 : index
    %30 = vector.load %arg1[%29, %c0_12, %c0_13] : memref<8x8x128xf32, #tpu.memory_space<vmem>>, vector<1x8x128xf32>
    %31 = vector.shape_cast %30 : vector<1x8x128xf32> to vector<8x128xf32>
    %cst_14 = arith.constant dense<0.000000e+00> : vector<8x128xf32>
    %32 = tpu.matmul %24, %3, %cst_14 {dimension_numbers = #tpu.dot_dimension_numbers<[1], [0], [0], [1], [0, 0, 1, 1], [], []>} : vector<8x32xf32>, vector<32x128xf32>, vector<8x128xf32> -> vector<8x128xf32>
    %33 = arith.addf %31, %32 : vector<8x128xf32>
    %34 = arith.negf %33 : vector<8x128xf32>
    %35 = math.exp %34 : vector<8x128xf32>
    %cst_15 = arith.constant 1.000000e+00 : f32
    %36 = vector.broadcast %cst_15 : f32 to vector<8x128xf32>
    %37 = arith.addf %36, %35 : vector<8x128xf32>
    %38 = arith.divf %36, %37 : vector<8x128xf32>
    %39 = vector.extract_strided_slice %38 {offsets = [0, 0], sizes = [8, 32], strides = [1, 1]} : vector<8x128xf32> to vector<8x32xf32>
    %40 = vector.extract_strided_slice %38 {offsets = [0, 32], sizes = [8, 32], strides = [1, 1]} : vector<8x128xf32> to vector<8x32xf32>
    %41 = vector.extract_strided_slice %38 {offsets = [0, 64], sizes = [8, 32], strides = [1, 1]} : vector<8x128xf32> to vector<8x32xf32>
    %42 = vector.extract_strided_slice %38 {offsets = [0, 96], sizes = [8, 32], strides = [1, 1]} : vector<8x128xf32> to vector<8x32xf32>
    %43 = arith.mulf %39, %22 : vector<8x32xf32>
    %44 = arith.mulf %40, %42 : vector<8x32xf32>
    %45 = arith.addf %43, %44 : vector<8x32xf32>
    %46 = math.tanh %45 : vector<8x32xf32>
    %47 = arith.mulf %41, %46 : vector<8x32xf32>
    %48 = arith.index_cast %c1_i32 : i32 to index
    %c0_16 = arith.constant 0 : index
    %c0_17 = arith.constant 0 : index
    %49 = vector.load %arg3[%48, %c0_16, %c0_17] : memref<8x8x32xf32, #tpu.memory_space<vmem>>, vector<1x8x32xf32>
    %50 = vector.shape_cast %49 : vector<1x8x32xf32> to vector<8x32xf32>
    %51 = vector.shape_cast %47 : vector<8x32xf32> to vector<1x8x32xf32>
    tpu.vector_store %arg3[%48, %c0_16, %c0_17], %51 {strides = array<i32>} : memref<8x8x32xf32, #tpu.memory_space<vmem>>, vector<1x8x32xf32>,
    %c2_i32 = arith.constant 2 : i32
    %52 = arith.index_cast %c2_i32 : i32 to index
    %c0_18 = arith.constant 0 : index
    %c0_19 = arith.constant 0 : index
    %53 = vector.load %arg1[%52, %c0_18, %c0_19] : memref<8x8x128xf32, #tpu.memory_space<vmem>>, vector<1x8x128xf32>
    %54 = vector.shape_cast %53 : vector<1x8x128xf32> to vector<8x128xf32>
    %cst_20 = arith.constant dense<0.000000e+00> : vector<8x128xf32>
    %55 = tpu.matmul %47, %3, %cst_20 {dimension_numbers = #tpu.dot_dimension_numbers<[1], [0], [0], [1], [0, 0, 1, 1], [], []>} : vector<8x32xf32>, vector<32x128xf32>, vector<8x128xf32> -> vector<8x128xf32>
    %56 = arith.addf %54, %55 : vector<8x128xf32>
    %57 = arith.negf %56 : vector<8x128xf32>
    %58 = math.exp %57 : vector<8x128xf32>
    %cst_21 = arith.constant 1.000000e+00 : f32
    %59 = vector.broadcast %cst_21 : f32 to vector<8x128xf32>
    %60 = arith.addf %59, %58 : vector<8x128xf32>
    %61 = arith.divf %59, %60 : vector<8x128xf32>
    %62 = vector.extract_strided_slice %61 {offsets = [0, 0], sizes = [8, 32], strides = [1, 1]} : vector<8x128xf32> to vector<8x32xf32>
    %63 = vector.extract_strided_slice %61 {offsets = [0, 32], sizes = [8, 32], strides = [1, 1]} : vector<8x128xf32> to vector<8x32xf32>
    %64 = vector.extract_strided_slice %61 {offsets = [0, 64], sizes = [8, 32], strides = [1, 1]} : vector<8x128xf32> to vector<8x32xf32>
    %65 = vector.extract_strided_slice %61 {offsets = [0, 96], sizes = [8, 32], strides = [1, 1]} : vector<8x128xf32> to vector<8x32xf32>
    %66 = arith.mulf %62, %45 : vector<8x32xf32>
    %67 = arith.mulf %63, %65 : vector<8x32xf32>
    %68 = arith.addf %66, %67 : vector<8x32xf32>
    %69 = math.tanh %68 : vector<8x32xf32>
    %70 = arith.mulf %64, %69 : vector<8x32xf32>
    %71 = arith.index_cast %c2_i32 : i32 to index
    %c0_22 = arith.constant 0 : index
    %c0_23 = arith.constant 0 : index
    %72 = vector.load %arg3[%71, %c0_22, %c0_23] : memref<8x8x32xf32, #tpu.memory_space<vmem>>, vector<1x8x32xf32>
    %73 = vector.shape_cast %72 : vector<1x8x32xf32> to vector<8x32xf32>
    %74 = vector.shape_cast %70 : vector<8x32xf32> to vector<1x8x32xf32>
    tpu.vector_store %arg3[%71, %c0_22, %c0_23], %74 {strides = array<i32>} : memref<8x8x32xf32, #tpu.memory_space<vmem>>, vector<1x8x32xf32>,
    %c3_i32 = arith.constant 3 : i32
    %75 = arith.index_cast %c3_i32 : i32 to index
    %c0_24 = arith.constant 0 : index
    %c0_25 = arith.constant 0 : index
    %76 = vector.load %arg1[%75, %c0_24, %c0_25] : memref<8x8x128xf32, #tpu.memory_space<vmem>>, vector<1x8x128xf32>
    %77 = vector.shape_cast %76 : vector<1x8x128xf32> to vector<8x128xf32>
    %cst_26 = arith.constant dense<0.000000e+00> : vector<8x128xf32>
    %78 = tpu.matmul %70, %3, %cst_26 {dimension_numbers = #tpu.dot_dimension_numbers<[1], [0], [0], [1], [0, 0, 1, 1], [], []>} : vector<8x32xf32>, vector<32x128xf32>, vector<8x128xf32> -> vector<8x128xf32>
    %79 = arith.addf %77, %78 : vector<8x128xf32>
    %80 = arith.negf %79 : vector<8x128xf32>
    %81 = math.exp %80 : vector<8x128xf32>
    %cst_27 = arith.constant 1.000000e+00 : f32
    %82 = vector.broadcast %cst_27 : f32 to vector<8x128xf32>
    %83 = arith.addf %82, %81 : vector<8x128xf32>
    %84 = arith.divf %82, %83 : vector<8x128xf32>
    %85 = vector.extract_strided_slice %84 {offsets = [0, 0], sizes = [8, 32], strides = [1, 1]} : vector<8x128xf32> to vector<8x32xf32>
    %86 = vector.extract_strided_slice %84 {offsets = [0, 32], sizes = [8, 32], strides = [1, 1]} : vector<8x128xf32> to vector<8x32xf32>
    %87 = vector.extract_strided_slice %84 {offsets = [0, 64], sizes = [8, 32], strides = [1, 1]} : vector<8x128xf32> to vector<8x32xf32>
    %88 = vector.extract_strided_slice %84 {offsets = [0, 96], sizes = [8, 32], strides = [1, 1]} : vector<8x128xf32> to vector<8x32xf32>
    %89 = arith.mulf %85, %68 : vector<8x32xf32>
    %90 = arith.mulf %86, %88 : vector<8x32xf32>
    %91 = arith.addf %89, %90 : vector<8x32xf32>
    %92 = math.tanh %91 : vector<8x32xf32>
    %93 = arith.mulf %87, %92 : vector<8x32xf32>
    %94 = arith.index_cast %c3_i32 : i32 to index
    %c0_28 = arith.constant 0 : index
    %c0_29 = arith.constant 0 : index
    %95 = vector.load %arg3[%94, %c0_28, %c0_29] : memref<8x8x32xf32, #tpu.memory_space<vmem>>, vector<1x8x32xf32>
    %96 = vector.shape_cast %95 : vector<1x8x32xf32> to vector<8x32xf32>
    %97 = vector.shape_cast %93 : vector<8x32xf32> to vector<1x8x32xf32>
    tpu.vector_store %arg3[%94, %c0_28, %c0_29], %97 {strides = array<i32>} : memref<8x8x32xf32, #tpu.memory_space<vmem>>, vector<1x8x32xf32>,
    %c4_i32 = arith.constant 4 : i32
    %98 = arith.index_cast %c4_i32 : i32 to index
    %c0_30 = arith.constant 0 : index
    %c0_31 = arith.constant 0 : index
    %99 = vector.load %arg1[%98, %c0_30, %c0_31] : memref<8x8x128xf32, #tpu.memory_space<vmem>>, vector<1x8x128xf32>
    %100 = vector.shape_cast %99 : vector<1x8x128xf32> to vector<8x128xf32>
    %cst_32 = arith.constant dense<0.000000e+00> : vector<8x128xf32>
    %101 = tpu.matmul %93, %3, %cst_32 {dimension_numbers = #tpu.dot_dimension_numbers<[1], [0], [0], [1], [0, 0, 1, 1], [], []>} : vector<8x32xf32>, vector<32x128xf32>, vector<8x128xf32> -> vector<8x128xf32>
    %102 = arith.addf %100, %101 : vector<8x128xf32>
    %103 = arith.negf %102 : vector<8x128xf32>
    %104 = math.exp %103 : vector<8x128xf32>
    %cst_33 = arith.constant 1.000000e+00 : f32
    %105 = vector.broadcast %cst_33 : f32 to vector<8x128xf32>
    %106 = arith.addf %105, %104 : vector<8x128xf32>
    %107 = arith.divf %105, %106 : vector<8x128xf32>
    %108 = vector.extract_strided_slice %107 {offsets = [0, 0], sizes = [8, 32], strides = [1, 1]} : vector<8x128xf32> to vector<8x32xf32>
    %109 = vector.extract_strided_slice %107 {offsets = [0, 32], sizes = [8, 32], strides = [1, 1]} : vector<8x128xf32> to vector<8x32xf32>
    %110 = vector.extract_strided_slice %107 {offsets = [0, 64], sizes = [8, 32], strides = [1, 1]} : vector<8x128xf32> to vector<8x32xf32>
    %111 = vector.extract_strided_slice %107 {offsets = [0, 96], sizes = [8, 32], strides = [1, 1]} : vector<8x128xf32> to vector<8x32xf32>
    %112 = arith.mulf %108, %91 : vector<8x32xf32>
    %113 = arith.mulf %109, %111 : vector<8x32xf32>
    %114 = arith.addf %112, %113 : vector<8x32xf32>
    %115 = math.tanh %114 : vector<8x32xf32>
    %116 = arith.mulf %110, %115 : vector<8x32xf32>
    %117 = arith.index_cast %c4_i32 : i32 to index
    %c0_34 = arith.constant 0 : index
    %c0_35 = arith.constant 0 : index
    %118 = vector.load %arg3[%117, %c0_34, %c0_35] : memref<8x8x32xf32, #tpu.memory_space<vmem>>, vector<1x8x32xf32>
    %119 = vector.shape_cast %118 : vector<1x8x32xf32> to vector<8x32xf32>
    %120 = vector.shape_cast %116 : vector<8x32xf32> to vector<1x8x32xf32>
    tpu.vector_store %arg3[%117, %c0_34, %c0_35], %120 {strides = array<i32>} : memref<8x8x32xf32, #tpu.memory_space<vmem>>, vector<1x8x32xf32>,
    %c5_i32 = arith.constant 5 : i32
    %121 = arith.index_cast %c5_i32 : i32 to index
    %c0_36 = arith.constant 0 : index
    %c0_37 = arith.constant 0 : index
    %122 = vector.load %arg1[%121, %c0_36, %c0_37] : memref<8x8x128xf32, #tpu.memory_space<vmem>>, vector<1x8x128xf32>
    %123 = vector.shape_cast %122 : vector<1x8x128xf32> to vector<8x128xf32>
    %cst_38 = arith.constant dense<0.000000e+00> : vector<8x128xf32>
    %124 = tpu.matmul %116, %3, %cst_38 {dimension_numbers = #tpu.dot_dimension_numbers<[1], [0], [0], [1], [0, 0, 1, 1], [], []>} : vector<8x32xf32>, vector<32x128xf32>, vector<8x128xf32> -> vector<8x128xf32>
    %125 = arith.addf %123, %124 : vector<8x128xf32>
    %126 = arith.negf %125 : vector<8x128xf32>
    %127 = math.exp %126 : vector<8x128xf32>
    %cst_39 = arith.constant 1.000000e+00 : f32
    %128 = vector.broadcast %cst_39 : f32 to vector<8x128xf32>
    %129 = arith.addf %128, %127 : vector<8x128xf32>
    %130 = arith.divf %128, %129 : vector<8x128xf32>
    %131 = vector.extract_strided_slice %130 {offsets = [0, 0], sizes = [8, 32], strides = [1, 1]} : vector<8x128xf32> to vector<8x32xf32>
    %132 = vector.extract_strided_slice %130 {offsets = [0, 32], sizes = [8, 32], strides = [1, 1]} : vector<8x128xf32> to vector<8x32xf32>
    %133 = vector.extract_strided_slice %130 {offsets = [0, 64], sizes = [8, 32], strides = [1, 1]} : vector<8x128xf32> to vector<8x32xf32>
    %134 = vector.extract_strided_slice %130 {offsets = [0, 96], sizes = [8, 32], strides = [1, 1]} : vector<8x128xf32> to vector<8x32xf32>
    %135 = arith.mulf %131, %114 : vector<8x32xf32>
    %136 = arith.mulf %132, %134 : vector<8x32xf32>
    %137 = arith.addf %135, %136 : vector<8x32xf32>
    %138 = math.tanh %137 : vector<8x32xf32>
    %139 = arith.mulf %133, %138 : vector<8x32xf32>
    %140 = arith.index_cast %c5_i32 : i32 to index
    %c0_40 = arith.constant 0 : index
    %c0_41 = arith.constant 0 : index
    %141 = vector.load %arg3[%140, %c0_40, %c0_41] : memref<8x8x32xf32, #tpu.memory_space<vmem>>, vector<1x8x32xf32>
    %142 = vector.shape_cast %141 : vector<1x8x32xf32> to vector<8x32xf32>
    %143 = vector.shape_cast %139 : vector<8x32xf32> to vector<1x8x32xf32>
    tpu.vector_store %arg3[%140, %c0_40, %c0_41], %143 {strides = array<i32>} : memref<8x8x32xf32, #tpu.memory_space<vmem>>, vector<1x8x32xf32>,
    %c6_i32 = arith.constant 6 : i32
    %144 = arith.index_cast %c6_i32 : i32 to index
    %c0_42 = arith.constant 0 : index
    %c0_43 = arith.constant 0 : index
    %145 = vector.load %arg1[%144, %c0_42, %c0_43] : memref<8x8x128xf32, #tpu.memory_space<vmem>>, vector<1x8x128xf32>
    %146 = vector.shape_cast %145 : vector<1x8x128xf32> to vector<8x128xf32>
    %cst_44 = arith.constant dense<0.000000e+00> : vector<8x128xf32>
    %147 = tpu.matmul %139, %3, %cst_44 {dimension_numbers = #tpu.dot_dimension_numbers<[1], [0], [0], [1], [0, 0, 1, 1], [], []>} : vector<8x32xf32>, vector<32x128xf32>, vector<8x128xf32> -> vector<8x128xf32>
    %148 = arith.addf %146, %147 : vector<8x128xf32>
    %149 = arith.negf %148 : vector<8x128xf32>
    %150 = math.exp %149 : vector<8x128xf32>
    %cst_45 = arith.constant 1.000000e+00 : f32
    %151 = vector.broadcast %cst_45 : f32 to vector<8x128xf32>
    %152 = arith.addf %151, %150 : vector<8x128xf32>
    %153 = arith.divf %151, %152 : vector<8x128xf32>
    %154 = vector.extract_strided_slice %153 {offsets = [0, 0], sizes = [8, 32], strides = [1, 1]} : vector<8x128xf32> to vector<8x32xf32>
    %155 = vector.extract_strided_slice %153 {offsets = [0, 32], sizes = [8, 32], strides = [1, 1]} : vector<8x128xf32> to vector<8x32xf32>
    %156 = vector.extract_strided_slice %153 {offsets = [0, 64], sizes = [8, 32], strides = [1, 1]} : vector<8x128xf32> to vector<8x32xf32>
    %157 = vector.extract_strided_slice %153 {offsets = [0, 96], sizes = [8, 32], strides = [1, 1]} : vector<8x128xf32> to vector<8x32xf32>
    %158 = arith.mulf %154, %137 : vector<8x32xf32>
    %159 = arith.mulf %155, %157 : vector<8x32xf32>
    %160 = arith.addf %158, %159 : vector<8x32xf32>
    %161 = math.tanh %160 : vector<8x32xf32>
    %162 = arith.mulf %156, %161 : vector<8x32xf32>
    %163 = arith.index_cast %c6_i32 : i32 to index
    %c0_46 = arith.constant 0 : index
    %c0_47 = arith.constant 0 : index
    %164 = vector.load %arg3[%163, %c0_46, %c0_47] : memref<8x8x32xf32, #tpu.memory_space<vmem>>, vector<1x8x32xf32>
    %165 = vector.shape_cast %164 : vector<1x8x32xf32> to vector<8x32xf32>
    %166 = vector.shape_cast %162 : vector<8x32xf32> to vector<1x8x32xf32>
    tpu.vector_store %arg3[%163, %c0_46, %c0_47], %166 {strides = array<i32>} : memref<8x8x32xf32, #tpu.memory_space<vmem>>, vector<1x8x32xf32>,
    %c7_i32 = arith.constant 7 : i32
    %167 = arith.index_cast %c7_i32 : i32 to index
    %c0_48 = arith.constant 0 : index
    %c0_49 = arith.constant 0 : index
    %168 = vector.load %arg1[%167, %c0_48, %c0_49] : memref<8x8x128xf32, #tpu.memory_space<vmem>>, vector<1x8x128xf32>
    %169 = vector.shape_cast %168 : vector<1x8x128xf32> to vector<8x128xf32>
    %cst_50 = arith.constant dense<0.000000e+00> : vector<8x128xf32>
    %170 = tpu.matmul %162, %3, %cst_50 {dimension_numbers = #tpu.dot_dimension_numbers<[1], [0], [0], [1], [0, 0, 1, 1], [], []>} : vector<8x32xf32>, vector<32x128xf32>, vector<8x128xf32> -> vector<8x128xf32>
    %171 = arith.addf %169, %170 : vector<8x128xf32>
    %172 = arith.negf %171 : vector<8x128xf32>
    %173 = math.exp %172 : vector<8x128xf32>
    %cst_51 = arith.constant 1.000000e+00 : f32
    %174 = vector.broadcast %cst_51 : f32 to vector<8x128xf32>
    %175 = arith.addf %174, %173 : vector<8x128xf32>
    %176 = arith.divf %174, %175 : vector<8x128xf32>
    %177 = vector.extract_strided_slice %176 {offsets = [0, 0], sizes = [8, 32], strides = [1, 1]} : vector<8x128xf32> to vector<8x32xf32>
    %178 = vector.extract_strided_slice %176 {offsets = [0, 32], sizes = [8, 32], strides = [1, 1]} : vector<8x128xf32> to vector<8x32xf32>
    %179 = vector.extract_strided_slice %176 {offsets = [0, 64], sizes = [8, 32], strides = [1, 1]} : vector<8x128xf32> to vector<8x32xf32>
    %180 = vector.extract_strided_slice %176 {offsets = [0, 96], sizes = [8, 32], strides = [1, 1]} : vector<8x128xf32> to vector<8x32xf32>
    %181 = arith.mulf %177, %160 : vector<8x32xf32>
    %182 = arith.mulf %178, %180 : vector<8x32xf32>
    %183 = arith.addf %181, %182 : vector<8x32xf32>
    %184 = math.tanh %183 : vector<8x32xf32>
    %185 = arith.mulf %179, %184 : vector<8x32xf32>
    %186 = arith.index_cast %c7_i32 : i32 to index
    %c0_52 = arith.constant 0 : index
    %c0_53 = arith.constant 0 : index
    %187 = vector.load %arg3[%186, %c0_52, %c0_53] : memref<8x8x32xf32, #tpu.memory_space<vmem>>, vector<1x8x32xf32>
    %188 = vector.shape_cast %187 : vector<1x8x32xf32> to vector<8x32xf32>
    %189 = vector.shape_cast %185 : vector<8x32xf32> to vector<1x8x32xf32>
    tpu.vector_store %arg3[%186, %c0_52, %c0_53], %189 {strides = array<i32>} : memref<8x8x32xf32, #tpu.memory_space<vmem>>, vector<1x8x32xf32>,
    %c8_i32 = arith.constant 8 : i32
    %c0_54 = arith.constant 0 : index
    %c0_55 = arith.constant 0 : index
    %190 = vector.load %arg6[%c0_54, %c0_55] : memref<8x32xf32, #tpu.memory_space<vmem>>, vector<8x32xf32>
    tpu.vector_store %arg6[%c0_54, %c0_55], %185 {strides = array<i32>} : memref<8x32xf32, #tpu.memory_space<vmem>>, vector<8x32xf32>,
    %c0_56 = arith.constant 0 : index
    %c0_57 = arith.constant 0 : index
    %191 = vector.load %arg7[%c0_56, %c0_57] : memref<8x32xf32, #tpu.memory_space<vmem>>, vector<8x32xf32>
    tpu.vector_store %arg7[%c0_56, %c0_57], %183 {strides = array<i32>} : memref<8x32xf32, #tpu.memory_space<vmem>>, vector<8x32xf32>,
    %c0_i32_58 = arith.constant 0 : i32
    %192 = arith.cmpi eq, %arg0, %c0_i32_58 : i32
    %193 = arith.extui %192 : i1 to i32
    %c0_i32_59 = arith.constant 0 : i32
    %194 = arith.cmpi ne, %193, %c0_i32_59 : i32
    scf.if %194 {
      %c0_60 = arith.constant 0 : index
      %c0_61 = arith.constant 0 : index
      %195 = vector.load %arg4[%c0_60, %c0_61] : memref<8x32xf32, #tpu.memory_space<vmem>>, vector<8x32xf32>
      tpu.vector_store %arg4[%c0_60, %c0_61], %185 {strides = array<i32>} : memref<8x32xf32, #tpu.memory_space<vmem>>, vector<8x32xf32>,
      %c0_62 = arith.constant 0 : index
      %c0_63 = arith.constant 0 : index
      %196 = vector.load %arg5[%c0_62, %c0_63] : memref<8x32xf32, #tpu.memory_space<vmem>>, vector<8x32xf32>
      tpu.vector_store %arg5[%c0_62, %c0_63], %183 {strides = array<i32>} : memref<8x32xf32, #tpu.memory_space<vmem>>, vector<8x32xf32>,
    } else {
    }
    return
  }
  func.func @transform_0(%arg0: i32) -> (i32, i32, i32) {
    %c0_i32 = arith.constant 0 : i32
    %c0_i32_0 = arith.constant 0 : i32
    %c0_i32_1 = arith.constant 0 : i32
    return %arg0, %c0_i32, %c0_i32_0 : i32, i32, i32
  }
  func.func @transform_1(%arg0: i32) -> (i32, i32) {
    %c0_i32 = arith.constant 0 : i32
    %c0_i32_0 = arith.constant 0 : i32
    %c0_i32_1 = arith.constant 0 : i32
    return %c0_i32, %c0_i32_0 : i32, i32
  }
  func.func @transform_2(%arg0: i32) -> (i32, i32, i32) {
    %c0_i32 = arith.constant 0 : i32
    %c0_i32_0 = arith.constant 0 : i32
    %c0_i32_1 = arith.constant 0 : i32
    return %arg0, %c0_i32, %c0_i32_0 : i32, i32, i32
  }
  func.func @transform_3(%arg0: i32) -> (i32, i32) {
    %c0_i32 = arith.constant 0 : i32
    %c0_i32_0 = arith.constant 0 : i32
    %c0_i32_1 = arith.constant 0 : i32
    return %c0_i32, %c0_i32_0 : i32, i32
  }
  func.func @transform_4(%arg0: i32) -> (i32, i32) {
    %c0_i32 = arith.constant 0 : i32
    %c0_i32_0 = arith.constant 0 : i32
    %c0_i32_1 = arith.constant 0 : i32
    return %c0_i32, %c0_i32_0 : i32, i32
  }
}

</mosaic_0001>

<llo_original>
// kernel: lstm_forward.1
$region0: #{lstm_forward.1}
  #allocation0 [shape = 'u32[]', space=smem, size = 0x4, offset = 0x4, fixed_abs, tag = 'smem constant byte address 0x4 - core index']
  #allocation1 [shape = 'u32[144,128]{1,0:T(1,128)}', space=vmem, size = 0x12000, scoped, tag = 'internal scratch']
  #allocation2 [shape = 'f32[8,32]{1,0:T(8,128)}', space=vmem, size = 0x1000, scoped, tag = 'scratch operand']
  #allocation3 [shape = 'f32[8,32]{1,0:T(8,128)}', space=vmem, size = 0x1000, scoped, tag = 'scratch operand']
  %s0 = inlined_call_operand.vmem [shape: f32[8,8,128], index: 0, kind: input, shape index: {}]
  %s1 = inlined_call_operand.vmem [shape: f32[32,128], index: 1, kind: input, shape index: {}]
  %s2 = inlined_call_operand.vmem [shape: f32[8,8,32], index: 2, kind: output, shape index: {0}]
  %s3 = inlined_call_operand.hbm [shape: f32[8,32], index: 3, kind: output, shape index: {1}]
  %s4 = inlined_call_operand.hbm [shape: f32[8,32], index: 4, kind: output, shape index: {2}]
  %5 = xla_tuple %s2, %s3, %s4
  %s6 = sld [smem:[#allocation0]]
  $region42: #{lstm_forward.1} parent=0
    _
  %s8 = ssub.s32 1, %s6
  %s9 = scalar_select 0, %s8, %s6
  $region1: #{lstm_forward.1} parent=0
    #allocation4 [shape = 'u8[4096]{0}', space=vmem, size = 0x1000, scoped, tag = 'output window, operand 1, single buffered']
    #allocation5 [shape = 's32[1]{0}', space=sflag, size = 0x4, scoped, tag = 'scoped memory for lstm_forward.1']
    #allocation6 [shape = 'u8[4096]{0}', space=vmem, size = 0x1000, scoped, tag = 'output window, operand 2, single buffered']
    #allocation7 [shape = 's32[1]{0}', space=sflag, size = 0x4, scoped, tag = 'scoped memory for lstm_forward.1']
    %10 = vsyncpa [#allocation5], 0
    %11 = vsyncpa [#allocation7], 0
    // Predicated region
    $region2: #{lstm_forward.1} parent=1 // pred_check
      _
    $region3: #{lstm_forward.1} parent=1 // pred_check_branch
      %13 = sbr.rel (0) target = $region5
    $region4: #{lstm_forward.1} parent=1 // pred_region
      _
    $region5: #{lstm_forward.1} parent=1 // pred_fallthru
      _
    // Predicated region
    $region6: #{lstm_forward.1} parent=1 // pred_check
      _
    $region7: #{lstm_forward.1} parent=1 // pred_check_branch
      %15 = sbr.rel (0) target = $region9
    $region8: #{lstm_forward.1} parent=1 // pred_region
      _
    $region9: #{lstm_forward.1} parent=1 // pred_fallthru
      _
    %p16 = scmp.eq.s32.totalorder 0, 0
    // Predicated region
    $region10: #{lstm_forward.1} parent=1 // pred_check
      %p17 = pneg %p16
    $region11: #{lstm_forward.1} parent=1 // pred_check_branch
      %19 = sbr.rel (%p17) target = $region13
    $region12: #{lstm_forward.1} parent=1 // pred_region
      %vm20 = vcmask 261120
      %21 = vst.msk [vmem:[#allocation2] sm:$0xff] %vm20, 0.0
      %22 = vst.msk [vmem:[#allocation3] sm:$0xff] %vm20, 0.0
    $region13: #{lstm_forward.1} parent=1 // pred_fallthru
      _
    %v23 = vld [vmem:[%s1] sm:$0xff]
    %v24 = vld [vmem:[%s1 + $0x8] sm:$0xff]
    %v25 = vld [vmem:[%s1 + $0x10] sm:$0xff]
    %v26 = vld [vmem:[%s1 + $0x18] sm:$0xff]
    %v27 = vld [vmem:[#allocation2] sm:$0xff]
    %v28 = vld [vmem:[#allocation3] sm:$0xff]
    %v29 = vld [vmem:[%s0] sm:$0xff]
    %vm30 = vcmask 261120
    %v32 = vsel %vm30, %v27, 0
    %34 = vmatprep.subr.mxu0 0.0
    %35 = vmatpush1.msra.mxu0 %v23
    %36 = vmatprep.subr.mxu0 0.0
    %37 = vmatpush1.msra.mxu0 %v24
    %38 = vmatprep.subr.mxu0 0.0
    %39 = vmatpush1.msra.mxu0 %v25
    %40 = vmatprep.subr.mxu0 0.0
    %41 = vmatpush1.msra.mxu0 %v26
    %42 = vmatprep.subr.mxu0 0.0
    %43 = vmatpush1.msra.mxu0 0.0
    %44 = vmatprep.subr.mxu0 0.0
    %45 = vmatpush1.msra.mxu0 0.0
    %46 = vmatprep.subr.mxu0 0.0
    %47 = vmatpush1.msra.mxu0 0.0
    %48 = vmatprep.subr.mxu0 0.0
    %49 = vmatpush1.msra.mxu0 0.0
    %50 = vmatprep.subr.mxu0 0.0
    %51 = vmatpush1.msra.mxu0 0.0
    %52 = vmatprep.subr.mxu0 0.0
    %53 = vmatpush1.msra.mxu0 0.0
    %54 = vmatprep.subr.mxu0 0.0
    %55 = vmatpush1.msra.mxu0 0.0
    %56 = vmatprep.subr.mxu0 0.0
    %57 = vmatpush1.msra.mxu0 0.0
    %58 = vmatprep.subr.mxu0 0.0
    %59 = vmatpush1.msra.mxu0 0.0
    %60 = vmatprep.subr.mxu0 0.0
    %61 = vmatpush1.msra.mxu0 0.0
    %62 = vmatprep.subr.mxu0 0.0
    %63 = vmatpush1.msra.mxu0 0.0
    %64 = vmatprep.subr.mxu0 0.0
    %65 = vmatpush1.msra.mxu0 0.0
    %66 = vmatprep.subr.mxu0 0.0
    %67 = vmatpush1.msra.mxu0 0.0
    %68 = vmatprep.subr.mxu0 0.0
    %69 = vmatpush1.msra.mxu0 0.0
    %70 = vmatprep.subr.mxu0 0.0
    %71 = vmatpush1.msra.mxu0 0.0
    %72 = vmatprep.subr.mxu0 0.0
    %73 = vmatpush1.msra.mxu0 0.0
    %74 = vmatprep.subr.mxu0 0.0
    %75 = vmatpush1.msra.mxu0 0.0
    %76 = vmatprep.subr.mxu0 0.0
    %77 = vmatpush1.msra.mxu0 0.0
    %78 = vmatprep.subr.mxu0 0.0
    %79 = vmatpush1.msra.mxu0 0.0
    %80 = vmatprep.subr.mxu0 0.0
    %81 = vmatpush1.msra.mxu0 0.0
    %82 = vmatprep.subr.mxu0 0.0
    %83 = vmatpush1.msra.mxu0 0.0
    %84 = vmatprep.subr.mxu0 0.0
    %85 = vmatpush1.msra.mxu0 0.0
    %86 = vmatprep.subr.mxu0 0.0
    %87 = vmatpush1.msra.mxu0 0.0
    %88 = vmatprep.subr.mxu0 0.0
    %89 = vmatpush1.msra.mxu0 0.0
    %90 = vmatprep.subr.mxu0 0.0
    %91 = vmatpush1.msra.mxu0 0.0
    %92 = vmatprep.subr.mxu0 0.0
    %93 = vmatpush1.msra.mxu0 0.0
    %94 = vmatprep.subr.mxu0 0.0
    %95 = vmatpush1.msra.mxu0 0.0
    %96 = vmatprep.subr.mxu0 0.0
    %97 = vmatpush1.msra.mxu0 0.0
    %98 = vmatprep.mubr.f32.mxu0 0.0
    %99 = vmatmul.mubr.f32.gmra.mrb[0].mxu0 %v32
    %v100 = vpop.f32.mrb[0].mxu0
    %v101 = vadd.f32 0.0, %v100
    %v102 = vpop.f32.mrb[0].mxu0
    %103 = vdwg.mxu0
    %v104 = vadd.f32 %v29, %v101
    %v105 = vxor.u32 %v104, 2147483648
    %v106 = vmul.f32 %v105, 1.442695
    %v107 = vpow.pop %v106
    %v108 = vadd.f32 %v107, 1.0
    %v109 = vrcp.pop %v108
    %v110 = vmul.f32 1.0, %v109
    %v111 = vmul.f32 %v110, %v28
    %113 = vrot.lane.b32.xlu0 %v110, 64
    %v114 = vpop.permute.xlu0 %113
    %v116 = vmul.f32 %v110, %v114
    %118 = vrot.lane.b32.xlu0 %v116, 96
    %v119 = vpop.permute.xlu0 %118
    %v121 = vadd.f32 %v111, %v119
    %v122 = vtanh.pop %v121
    %124 = vrot.lane.b32.xlu0 %v122, 64
    %v125 = vpop.permute.xlu0 %124
    %v127 = vmul.f32 %v110, %v125
    %129 = vrot.lane.b32.xlu0 %v127, 64
    %v130 = vpop.permute.xlu0 %129
    %132 = vst.msk [vmem:[%s2] sm:$0xff] %vm30, %v130
    %s133 = scalar_lea.vmem %s0, 8
    %v134 = vld [vmem:[%s133] sm:$0xff]
    %v135 = vsel %vm30, %v130, 0
    %137 = vmatprep.subr.mxu0 0.0
    %138 = vmatpush1.msra.mxu0 %v23
    %139 = vmatprep.subr.mxu0 0.0
    %140 = vmatpush1.msra.mxu0 %v24
    %141 = vmatprep.subr.mxu0 0.0
    %142 = vmatpush1.msra.mxu0 %v25
    %143 = vmatprep.subr.mxu0 0.0
    %144 = vmatpush1.msra.mxu0 %v26
    %145 = vmatprep.subr.mxu0 0.0
    %146 = vmatpush1.msra.mxu0 0.0
    %147 = vmatprep.subr.mxu0 0.0
    %148 = vmatpush1.msra.mxu0 0.0
    %149 = vmatprep.subr.mxu0 0.0
    %150 = vmatpush1.msra.mxu0 0.0
    %151 = vmatprep.subr.mxu0 0.0
    %152 = vmatpush1.msra.mxu0 0.0
    %153 = vmatprep.subr.mxu0 0.0
    %154 = vmatpush1.msra.mxu0 0.0
    %155 = vmatprep.subr.mxu0 0.0
    %156 = vmatpush1.msra.mxu0 0.0
    %157 = vmatprep.subr.mxu0 0.0
    %158 = vmatpush1.msra.mxu0 0.0
    %159 = vmatprep.subr.mxu0 0.0
    %160 = vmatpush1.msra.mxu0 0.0
    %161 = vmatprep.subr.mxu0 0.0
    %162 = vmatpush1.msra.mxu0 0.0
    %163 = vmatprep.subr.mxu0 0.0
    %164 = vmatpush1.msra.mxu0 0.0
    %165 = vmatprep.subr.mxu0 0.0
    %166 = vmatpush1.msra.mxu0 0.0
    %167 = vmatprep.subr.mxu0 0.0
    %168 = vmatpush1.msra.mxu0 0.0
    %169 = vmatprep.subr.mxu0 0.0
    %170 = vmatpush1.msra.mxu0 0.0
    %171 = vmatprep.subr.mxu0 0.0
    %172 = vmatpush1.msra.mxu0 0.0
    %173 = vmatprep.subr.mxu0 0.0
    %174 = vmatpush1.msra.mxu0 0.0
    %175 = vmatprep.subr.mxu0 0.0
    %176 = vmatpush1.msra.mxu0 0.0
    %177 = vmatprep.subr.mxu0 0.0
    %178 = vmatpush1.msra.mxu0 0.0
    %179 = vmatprep.subr.mxu0 0.0
    %180 = vmatpush1.msra.mxu0 0.0
    %181 = vmatprep.subr.mxu0 0.0
    %182 = vmatpush1.msra.mxu0 0.0
    %183 = vmatprep.subr.mxu0 0.0
    %184 = vmatpush1.msra.mxu0 0.0
    %185 = vmatprep.subr.mxu0 0.0
    %186 = vmatpush1.msra.mxu0 0.0
    %187 = vmatprep.subr.mxu0 0.0
    %188 = vmatpush1.msra.mxu0 0.0
    %189 = vmatprep.subr.mxu0 0.0
    %190 = vmatpush1.msra.mxu0 0.0
    %191 = vmatprep.subr.mxu0 0.0
    %192 = vmatpush1.msra.mxu0 0.0
    %193 = vmatprep.subr.mxu0 0.0
    %194 = vmatpush1.msra.mxu0 0.0
    %195 = vmatprep.subr.mxu0 0.0
    %196 = vmatpush1.msra.mxu0 0.0
    %197 = vmatprep.subr.mxu0 0.0
    %198 = vmatpush1.msra.mxu0 0.0
    %199 = vmatprep.subr.mxu0 0.0
    %200 = vmatpush1.msra.mxu0 0.0
    %201 = vmatprep.mubr.f32.mxu0 0.0
    %202 = vmatmul.mubr.f32.gmra.mrb[0].mxu0 %v135
    %v203 = vpop.f32.mrb[0].mxu0
    %v204 = vadd.f32 0.0, %v203
    %v205 = vpop.f32.mrb[0].mxu0
    %206 = vdwg.mxu0
    %v207 = vadd.f32 %v134, %v204
    %v208 = vxor.u32 %v207, 2147483648
    %v209 = vmul.f32 %v208, 1.442695
    %v210 = vpow.pop %v209
    %v211 = vadd.f32 %v210, 1.0
    %v212 = vrcp.pop %v211
    %v213 = vmul.f32 1.0, %v212
    %v214 = vmul.f32 %v213, %v121
    %216 = vrot.lane.b32.xlu0 %v213, 64
    %v217 = vpop.permute.xlu0 %216
    %v219 = vmul.f32 %v213, %v217
    %221 = vrot.lane.b32.xlu0 %v219, 96
    %v222 = vpop.permute.xlu0 %221
    %v224 = vadd.f32 %v214, %v222
    %v225 = vtanh.pop %v224
    %227 = vrot.lane.b32.xlu0 %v225, 64
    %v228 = vpop.permute.xlu0 %227
    %v230 = vmul.f32 %v213, %v228
    %232 = vrot.lane.b32.xlu0 %v230, 64
    %v233 = vpop.permute.xlu0 %232
    %s235 = scalar_lea.vmem %s2, 8
    %236 = vst.msk [vmem:[%s235] sm:$0xff] %vm30, %v233
    %s237 = scalar_lea.vmem %s0, 16
    %v238 = vld [vmem:[%s237] sm:$0xff]
    %v239 = vsel %vm30, %v233, 0
    %241 = vmatprep.subr.mxu0 0.0
    %242 = vmatpush1.msra.mxu0 %v23
    %243 = vmatprep.subr.mxu0 0.0
    %244 = vmatpush1.msra.mxu0 %v24
    %245 = vmatprep.subr.mxu0 0.0
    %246 = vmatpush1.msra.mxu0 %v25
    %247 = vmatprep.subr.mxu0 0.0
    %248 = vmatpush1.msra.mxu0 %v26
    %249 = vmatprep.subr.mxu0 0.0
    %250 = vmatpush1.msra.mxu0 0.0
    %251 = vmatprep.subr.mxu0 0.0
    %252 = vmatpush1.msra.mxu0 0.0
    %253 = vmatprep.subr.mxu0 0.0
    %254 = vmatpush1.msra.mxu0 0.0
    %255 = vmatprep.subr.mxu0 0.0
    %256 = vmatpush1.msra.mxu0 0.0
    %257 = vmatprep.subr.mxu0 0.0
    %258 = vmatpush1.msra.mxu0 0.0
    %259 = vmatprep.subr.mxu0 0.0
    %260 = vmatpush1.msra.mxu0 0.0
    %261 = vmatprep.subr.mxu0 0.0
    %262 = vmatpush1.msra.mxu0 0.0
    %263 = vmatprep.subr.mxu0 0.0
    %264 = vmatpush1.msra.mxu0 0.0
    %265 = vmatprep.subr.mxu0 0.0
    %266 = vmatpush1.msra.mxu0 0.0
    %267 = vmatprep.subr.mxu0 0.0
    %268 = vmatpush1.msra.mxu0 0.0
    %269 = vmatprep.subr.mxu0 0.0
    %270 = vmatpush1.msra.mxu0 0.0
    %271 = vmatprep.subr.mxu0 0.0
    %272 = vmatpush1.msra.mxu0 0.0
    %273 = vmatprep.subr.mxu0 0.0
    %274 = vmatpush1.msra.mxu0 0.0
    %275 = vmatprep.subr.mxu0 0.0
    %276 = vmatpush1.msra.mxu0 0.0
    %277 = vmatprep.subr.mxu0 0.0
    %278 = vmatpush1.msra.mxu0 0.0
    %279 = vmatprep.subr.mxu0 0.0
    %280 = vmatpush1.msra.mxu0 0.0
    %281 = vmatprep.subr.mxu0 0.0
    %282 = vmatpush1.msra.mxu0 0.0
    %283 = vmatprep.subr.mxu0 0.0
    %284 = vmatpush1.msra.mxu0 0.0
    %285 = vmatprep.subr.mxu0 0.0
    %286 = vmatpush1.msra.mxu0 0.0
    %287 = vmatprep.subr.mxu0 0.0
    %288 = vmatpush1.msra.mxu0 0.0
    %289 = vmatprep.subr.mxu0 0.0
    %290 = vmatpush1.msra.mxu0 0.0
    %291 = vmatprep.subr.mxu0 0.0
    %292 = vmatpush1.msra.mxu0 0.0
    %293 = vmatprep.subr.mxu0 0.0
    %294 = vmatpush1.msra.mxu0 0.0
    %295 = vmatprep.subr.mxu0 0.0
    %296 = vmatpush1.msra.mxu0 0.0
    %297 = vmatprep.subr.mxu0 0.0
    %298 = vmatpush1.msra.mxu0 0.0
    %299 = vmatprep.subr.mxu0 0.0
    %300 = vmatpush1.msra.mxu0 0.0
    %301 = vmatprep.subr.mxu0 0.0
    %302 = vmatpush1.msra.mxu0 0.0
    %303 = vmatprep.subr.mxu0 0.0
    %304 = vmatpush1.msra.mxu0 0.0
    %305 = vmatprep.mubr.f32.mxu0 0.0
    %306 = vmatmul.mubr.f32.gmra.mrb[0].mxu0 %v239
    %v307 = vpop.f32.mrb[0].mxu0
    %v308 = vadd.f32 0.0, %v307
    %v309 = vpop.f32.mrb[0].mxu0
    %310 = vdwg.mxu0
    %v311 = vadd.f32 %v238, %v308
    %v312 = vxor.u32 %v311, 2147483648
    %v313 = vmul.f32 %v312, 1.442695
    %v314 = vpow.pop %v313
    %v315 = vadd.f32 %v314, 1.0
    %v316 = vrcp.pop %v315
    %v317 = vmul.f32 1.0, %v316
    %v318 = vmul.f32 %v317, %v224
    %320 = vrot.lane.b32.xlu0 %v317, 64
    %v321 = vpop.permute.xlu0 %320
    %v323 = vmul.f32 %v317, %v321
    %325 = vrot.lane.b32.xlu0 %v323, 96
    %v326 = vpop.permute.xlu0 %325
    %v328 = vadd.f32 %v318, %v326
    %v329 = vtanh.pop %v328
    %331 = vrot.lane.b32.xlu0 %v329, 64
    %v332 = vpop.permute.xlu0 %331
    %v334 = vmul.f32 %v317, %v332
    %336 = vrot.lane.b32.xlu0 %v334, 64
    %v337 = vpop.permute.xlu0 %336
    %s339 = scalar_lea.vmem %s2, 16
    %340 = vst.msk [vmem:[%s339] sm:$0xff] %vm30, %v337
    %s341 = scalar_lea.vmem %s0, 24
    %v342 = vld [vmem:[%s341] sm:$0xff]
    %v343 = vsel %vm30, %v337, 0
    %345 = vmatprep.subr.mxu0 0.0
    %346 = vmatpush1.msra.mxu0 %v23
    %347 = vmatprep.subr.mxu0 0.0
    %348 = vmatpush1.msra.mxu0 %v24
    %349 = vmatprep.subr.mxu0 0.0
    %350 = vmatpush1.msra.mxu0 %v25
    %351 = vmatprep.subr.mxu0 0.0
    %352 = vmatpush1.msra.mxu0 %v26
    %353 = vmatprep.subr.mxu0 0.0
    %354 = vmatpush1.msra.mxu0 0.0
    %355 = vmatprep.subr.mxu0 0.0
    %356 = vmatpush1.msra.mxu0 0.0
    %357 = vmatprep.subr.mxu0 0.0
    %358 = vmatpush1.msra.mxu0 0.0
    %359 = vmatprep.subr.mxu0 0.0
    %360 = vmatpush1.msra.mxu0 0.0
    %361 = vmatprep.subr.mxu0 0.0
    %362 = vmatpush1.msra.mxu0 0.0
    %363 = vmatprep.subr.mxu0 0.0
    %364 = vmatpush1.msra.mxu0 0.0
    %365 = vmatprep.subr.mxu0 0.0
    %366 = vmatpush1.msra.mxu0 0.0
    %367 = vmatprep.subr.mxu0 0.0
    %368 = vmatpush1.msra.mxu0 0.0
    %369 = vmatprep.subr.mxu0 0.0
    %370 = vmatpush1.msra.mxu0 0.0
    %371 = vmatprep.subr.mxu0 0.0
    %372 = vmatpush1.msra.mxu0 0.0
    %373 = vmatprep.subr.mxu0 0.0
    %374 = vmatpush1.msra.mxu0 0.0
    %375 = vmatprep.subr.mxu0 0.0
    %376 = vmatpush1.msra.mxu0 0.0
    %377 = vmatprep.subr.mxu0 0.0
    %378 = vmatpush1.msra.mxu0 0.0
    %379 = vmatprep.subr.mxu0 0.0
    %380 = vmatpush1.msra.mxu0 0.0
    %381 = vmatprep.subr.mxu0 0.0
    %382 = vmatpush1.msra.mxu0 0.0
    %383 = vmatprep.subr.mxu0 0.0
    %384 = vmatpush1.msra.mxu0 0.0
    %385 = vmatprep.subr.mxu0 0.0
    %386 = vmatpush1.msra.mxu0 0.0
    %387 = vmatprep.subr.mxu0 0.0
    %388 = vmatpush1.msra.mxu0 0.0
    %389 = vmatprep.subr.mxu0 0.0
    %390 = vmatpush1.msra.mxu0 0.0
    %391 = vmatprep.subr.mxu0 0.0
    %392 = vmatpush1.msra.mxu0 0.0
    %393 = vmatprep.subr.mxu0 0.0
    %394 = vmatpush1.msra.mxu0 0.0
    %395 = vmatprep.subr.mxu0 0.0
    %396 = vmatpush1.msra.mxu0 0.0
    %397 = vmatprep.subr.mxu0 0.0
    %398 = vmatpush1.msra.mxu0 0.0
    %399 = vmatprep.subr.mxu0 0.0
    %400 = vmatpush1.msra.mxu0 0.0
    %401 = vmatprep.subr.mxu0 0.0
    %402 = vmatpush1.msra.mxu0 0.0
    %403 = vmatprep.subr.mxu0 0.0
    %404 = vmatpush1.msra.mxu0 0.0
    %405 = vmatprep.subr.mxu0 0.0
    %406 = vmatpush1.msra.mxu0 0.0
    %407 = vmatprep.subr.mxu0 0.0
    %408 = vmatpush1.msra.mxu0 0.0
    %409 = vmatprep.mubr.f32.mxu0 0.0
    %410 = vmatmul.mubr.f32.gmra.mrb[0].mxu0 %v343
    %v411 = vpop.f32.mrb[0].mxu0
    %v412 = vadd.f32 0.0, %v411
    %v413 = vpop.f32.mrb[0].mxu0
    %414 = vdwg.mxu0
    %v415 = vadd.f32 %v342, %v412
    %v416 = vxor.u32 %v415, 2147483648
    %v417 = vmul.f32 %v416, 1.442695
    %v418 = vpow.pop %v417
    %v419 = vadd.f32 %v418, 1.0
    %v420 = vrcp.pop %v419
    %v421 = vmul.f32 1.0, %v420
    %v422 = vmul.f32 %v421, %v328
    %424 = vrot.lane.b32.xlu0 %v421, 64
    %v425 = vpop.permute.xlu0 %424
    %v427 = vmul.f32 %v421, %v425
    %429 = vrot.lane.b32.xlu0 %v427, 96
    %v430 = vpop.permute.xlu0 %429
    %v432 = vadd.f32 %v422, %v430
    %v433 = vtanh.pop %v432
    %435 = vrot.lane.b32.xlu0 %v433, 64
    %v436 = vpop.permute.xlu0 %435
    %v438 = vmul.f32 %v421, %v436
    %440 = vrot.lane.b32.xlu0 %v438, 64
    %v441 = vpop.permute.xlu0 %440
    %s443 = scalar_lea.vmem %s2, 24
    %444 = vst.msk [vmem:[%s443] sm:$0xff] %vm30, %v441
    %s445 = scalar_lea.vmem %s0, 32
    %v446 = vld [vmem:[%s445] sm:$0xff]
    %v447 = vsel %vm30, %v441, 0
    %449 = vmatprep.subr.mxu0 0.0
    %450 = vmatpush1.msra.mxu0 %v23
    %451 = vmatprep.subr.mxu0 0.0
    %452 = vmatpush1.msra.mxu0 %v24
    %453 = vmatprep.subr.mxu0 0.0
    %454 = vmatpush1.msra.mxu0 %v25
    %455 = vmatprep.subr.mxu0 0.0
    %456 = vmatpush1.msra.mxu0 %v26
    %457 = vmatprep.subr.mxu0 0.0
    %458 = vmatpush1.msra.mxu0 0.0
    %459 = vmatprep.subr.mxu0 0.0
    %460 = vmatpush1.msra.mxu0 0.0
    %461 = vmatprep.subr.mxu0 0.0
    %462 = vmatpush1.msra.mxu0 0.0
    %463 = vmatprep.subr.mxu0 0.0
    %464 = vmatpush1.msra.mxu0 0.0
    %465 = vmatprep.subr.mxu0 0.0
    %466 = vmatpush1.msra.mxu0 0.0
    %467 = vmatprep.subr.mxu0 0.0
    %468 = vmatpush1.msra.mxu0 0.0
    %469 = vmatprep.subr.mxu0 0.0
    %470 = vmatpush1.msra.mxu0 0.0
    %471 = vmatprep.subr.mxu0 0.0
    %472 = vmatpush1.msra.mxu0 0.0
    %473 = vmatprep.subr.mxu0 0.0
    %474 = vmatpush1.msra.mxu0 0.0
    %475 = vmatprep.subr.mxu0 0.0
    %476 = vmatpush1.msra.mxu0 0.0
    %477 = vmatprep.subr.mxu0 0.0
    %478 = vmatpush1.msra.mxu0 0.0
    %479 = vmatprep.subr.mxu0 0.0
    %480 = vmatpush1.msra.mxu0 0.0
    %481 = vmatprep.subr.mxu0 0.0
    %482 = vmatpush1.msra.mxu0 0.0
    %483 = vmatprep.subr.mxu0 0.0
    %484 = vmatpush1.msra.mxu0 0.0
    %485 = vmatprep.subr.mxu0 0.0
    %486 = vmatpush1.msra.mxu0 0.0
    %487 = vmatprep.subr.mxu0 0.0
    %488 = vmatpush1.msra.mxu0 0.0
    %489 = vmatprep.subr.mxu0 0.0
    %490 = vmatpush1.msra.mxu0 0.0
    %491 = vmatprep.subr.mxu0 0.0
    %492 = vmatpush1.msra.mxu0 0.0
    %493 = vmatprep.subr.mxu0 0.0
    %494 = vmatpush1.msra.mxu0 0.0
    %495 = vmatprep.subr.mxu0 0.0
    %496 = vmatpush1.msra.mxu0 0.0
    %497 = vmatprep.subr.mxu0 0.0
    %498 = vmatpush1.msra.mxu0 0.0
    %499 = vmatprep.subr.mxu0 0.0
    %500 = vmatpush1.msra.mxu0 0.0
    %501 = vmatprep.subr.mxu0 0.0
    %502 = vmatpush1.msra.mxu0 0.0
    %503 = vmatprep.subr.mxu0 0.0
    %504 = vmatpush1.msra.mxu0 0.0
    %505 = vmatprep.subr.mxu0 0.0
    %506 = vmatpush1.msra.mxu0 0.0
    %507 = vmatprep.subr.mxu0 0.0
    %508 = vmatpush1.msra.mxu0 0.0
    %509 = vmatprep.subr.mxu0 0.0
    %510 = vmatpush1.msra.mxu0 0.0
    %511 = vmatprep.subr.mxu0 0.0
    %512 = vmatpush1.msra.mxu0 0.0
    %513 = vmatprep.mubr.f32.mxu0 0.0
    %514 = vmatmul.mubr.f32.gmra.mrb[0].mxu0 %v447
    %v515 = vpop.f32.mrb[0].mxu0
    %v516 = vadd.f32 0.0, %v515
    %v517 = vpop.f32.mrb[0].mxu0
    %518 = vdwg.mxu0
    %v519 = vadd.f32 %v446, %v516
    %v520 = vxor.u32 %v519, 2147483648
    %v521 = vmul.f32 %v520, 1.442695
    %v522 = vpow.pop %v521
    %v523 = vadd.f32 %v522, 1.0
    %v524 = vrcp.pop %v523
    %v525 = vmul.f32 1.0, %v524
    %v526 = vmul.f32 %v525, %v432
    %528 = vrot.lane.b32.xlu0 %v525, 64
    %v529 = vpop.permute.xlu0 %528
    %v531 = vmul.f32 %v525, %v529
    %533 = vrot.lane.b32.xlu0 %v531, 96
    %v534 = vpop.permute.xlu0 %533
    %v536 = vadd.f32 %v526, %v534
    %v537 = vtanh.pop %v536
    %539 = vrot.lane.b32.xlu0 %v537, 64
    %v540 = vpop.permute.xlu0 %539
    %v542 = vmul.f32 %v525, %v540
    %544 = vrot.lane.b32.xlu0 %v542, 64
    %v545 = vpop.permute.xlu0 %544
    %s547 = scalar_lea.vmem %s2, 32
    %548 = vst.msk [vmem:[%s547] sm:$0xff] %vm30, %v545
    %s549 = scalar_lea.vmem %s0, 40
    %v550 = vld [vmem:[%s549] sm:$0xff]
    %v551 = vsel %vm30, %v545, 0
    %553 = vmatprep.subr.mxu0 0.0
    %554 = vmatpush1.msra.mxu0 %v23
    %555 = vmatprep.subr.mxu0 0.0
    %556 = vmatpush1.msra.mxu0 %v24
    %557 = vmatprep.subr.mxu0 0.0
    %558 = vmatpush1.msra.mxu0 %v25
    %559 = vmatprep.subr.mxu0 0.0
    %560 = vmatpush1.msra.mxu0 %v26
    %561 = vmatprep.subr.mxu0 0.0
    %562 = vmatpush1.msra.mxu0 0.0
    %563 = vmatprep.subr.mxu0 0.0
    %564 = vmatpush1.msra.mxu0 0.0
    %565 = vmatprep.subr.mxu0 0.0
    %566 = vmatpush1.msra.mxu0 0.0
    %567 = vmatprep.subr.mxu0 0.0
    %568 = vmatpush1.msra.mxu0 0.0
    %569 = vmatprep.subr.mxu0 0.0
    %570 = vmatpush1.msra.mxu0 0.0
    %571 = vmatprep.subr.mxu0 0.0
    %572 = vmatpush1.msra.mxu0 0.0
    %573 = vmatprep.subr.mxu0 0.0
    %574 = vmatpush1.msra.mxu0 0.0
    %575 = vmatprep.subr.mxu0 0.0
    %576 = vmatpush1.msra.mxu0 0.0
    %577 = vmatprep.subr.mxu0 0.0
    %578 = vmatpush1.msra.mxu0 0.0
    %579 = vmatprep.subr.mxu0 0.0
    %580 = vmatpush1.msra.mxu0 0.0
    %581 = vmatprep.subr.mxu0 0.0
    %582 = vmatpush1.msra.mxu0 0.0
    %583 = vmatprep.subr.mxu0 0.0
    %584 = vmatpush1.msra.mxu0 0.0
    %585 = vmatprep.subr.mxu0 0.0
    %586 = vmatpush1.msra.mxu0 0.0
    %587 = vmatprep.subr.mxu0 0.0
    %588 = vmatpush1.msra.mxu0 0.0
    %589 = vmatprep.subr.mxu0 0.0
    %590 = vmatpush1.msra.mxu0 0.0
    %591 = vmatprep.subr.mxu0 0.0
    %592 = vmatpush1.msra.mxu0 0.0
    %593 = vmatprep.subr.mxu0 0.0
    %594 = vmatpush1.msra.mxu0 0.0
    %595 = vmatprep.subr.mxu0 0.0
    %596 = vmatpush1.msra.mxu0 0.0
    %597 = vmatprep.subr.mxu0 0.0
    %598 = vmatpush1.msra.mxu0 0.0
    %599 = vmatprep.subr.mxu0 0.0
    %600 = vmatpush1.msra.mxu0 0.0
    %601 = vmatprep.subr.mxu0 0.0
    %602 = vmatpush1.msra.mxu0 0.0
    %603 = vmatprep.subr.mxu0 0.0
    %604 = vmatpush1.msra.mxu0 0.0
    %605 = vmatprep.subr.mxu0 0.0
    %606 = vmatpush1.msra.mxu0 0.0
    %607 = vmatprep.subr.mxu0 0.0
    %608 = vmatpush1.msra.mxu0 0.0
    %609 = vmatprep.subr.mxu0 0.0
    %610 = vmatpush1.msra.mxu0 0.0
    %611 = vmatprep.subr.mxu0 0.0
    %612 = vmatpush1.msra.mxu0 0.0
    %613 = vmatprep.subr.mxu0 0.0
    %614 = vmatpush1.msra.mxu0 0.0
    %615 = vmatprep.subr.mxu0 0.0
    %616 = vmatpush1.msra.mxu0 0.0
    %617 = vmatprep.mubr.f32.mxu0 0.0
    %618 = vmatmul.mubr.f32.gmra.mrb[0].mxu0 %v551
    %v619 = vpop.f32.mrb[0].mxu0
    %v620 = vadd.f32 0.0, %v619
    %v621 = vpop.f32.mrb[0].mxu0
    %622 = vdwg.mxu0
    %v623 = vadd.f32 %v550, %v620
    %v624 = vxor.u32 %v623, 2147483648
    %v625 = vmul.f32 %v624, 1.442695
    %v626 = vpow.pop %v625
    %v627 = vadd.f32 %v626, 1.0
    %v628 = vrcp.pop %v627
    %v629 = vmul.f32 1.0, %v628
    %v630 = vmul.f32 %v629, %v536
    %632 = vrot.lane.b32.xlu0 %v629, 64
    %v633 = vpop.permute.xlu0 %632
    %v635 = vmul.f32 %v629, %v633
    %637 = vrot.lane.b32.xlu0 %v635, 96
    %v638 = vpop.permute.xlu0 %637
    %v640 = vadd.f32 %v630, %v638
    %v641 = vtanh.pop %v640
    %643 = vrot.lane.b32.xlu0 %v641, 64
    %v644 = vpop.permute.xlu0 %643
    %v646 = vmul.f32 %v629, %v644
    %648 = vrot.lane.b32.xlu0 %v646, 64
    %v649 = vpop.permute.xlu0 %648
    %s651 = scalar_lea.vmem %s2, 40
    %652 = vst.msk [vmem:[%s651] sm:$0xff] %vm30, %v649
    %s653 = scalar_lea.vmem %s0, 48
    %v654 = vld [vmem:[%s653] sm:$0xff]
    %v655 = vsel %vm30, %v649, 0
    %657 = vmatprep.subr.mxu0 0.0
    %658 = vmatpush1.msra.mxu0 %v23
    %659 = vmatprep.subr.mxu0 0.0
    %660 = vmatpush1.msra.mxu0 %v24
    %661 = vmatprep.subr.mxu0 0.0
    %662 = vmatpush1.msra.mxu0 %v25
    %663 = vmatprep.subr.mxu0 0.0
    %664 = vmatpush1.msra.mxu0 %v26
    %665 = vmatprep.subr.mxu0 0.0
    %666 = vmatpush1.msra.mxu0 0.0
    %667 = vmatprep.subr.mxu0 0.0
    %668 = vmatpush1.msra.mxu0 0.0
    %669 = vmatprep.subr.mxu0 0.0
    %670 = vmatpush1.msra.mxu0 0.0
    %671 = vmatprep.subr.mxu0 0.0
    %672 = vmatpush1.msra.mxu0 0.0
    %673 = vmatprep.subr.mxu0 0.0
    %674 = vmatpush1.msra.mxu0 0.0
    %675 = vmatprep.subr.mxu0 0.0
    %676 = vmatpush1.msra.mxu0 0.0
    %677 = vmatprep.subr.mxu0 0.0
    %678 = vmatpush1.msra.mxu0 0.0
    %679 = vmatprep.subr.mxu0 0.0
    %680 = vmatpush1.msra.mxu0 0.0
    %681 = vmatprep.subr.mxu0 0.0
    %682 = vmatpush1.msra.mxu0 0.0
    %683 = vmatprep.subr.mxu0 0.0
    %684 = vmatpush1.msra.mxu0 0.0
    %685 = vmatprep.subr.mxu0 0.0
    %686 = vmatpush1.msra.mxu0 0.0
    %687 = vmatprep.subr.mxu0 0.0
    %688 = vmatpush1.msra.mxu0 0.0
    %689 = vmatprep.subr.mxu0 0.0
    %690 = vmatpush1.msra.mxu0 0.0
    %691 = vmatprep.subr.mxu0 0.0
    %692 = vmatpush1.msra.mxu0 0.0
    %693 = vmatprep.subr.mxu0 0.0
    %694 = vmatpush1.msra.mxu0 0.0
    %695 = vmatprep.subr.mxu0 0.0
    %696 = vmatpush1.msra.mxu0 0.0
    %697 = vmatprep.subr.mxu0 0.0
    %698 = vmatpush1.msra.mxu0 0.0
    %699 = vmatprep.subr.mxu0 0.0
    %700 = vmatpush1.msra.mxu0 0.0
    %701 = vmatprep.subr.mxu0 0.0
    %702 = vmatpush1.msra.mxu0 0.0
    %703 = vmatprep.subr.mxu0 0.0
    %704 = vmatpush1.msra.mxu0 0.0
    %705 = vmatprep.subr.mxu0 0.0
    %706 = vmatpush1.msra.mxu0 0.0
    %707 = vmatprep.subr.mxu0 0.0
    %708 = vmatpush1.msra.mxu0 0.0
    %709 = vmatprep.subr.mxu0 0.0
    %710 = vmatpush1.msra.mxu0 0.0
    %711 = vmatprep.subr.mxu0 0.0
    %712 = vmatpush1.msra.mxu0 0.0
    %713 = vmatprep.subr.mxu0 0.0
    %714 = vmatpush1.msra.mxu0 0.0
    %715 = vmatprep.subr.mxu0 0.0
    %716 = vmatpush1.msra.mxu0 0.0
    %717 = vmatprep.subr.mxu0 0.0
    %718 = vmatpush1.msra.mxu0 0.0
    %719 = vmatprep.subr.mxu0 0.0
    %720 = vmatpush1.msra.mxu0 0.0
    %721 = vmatprep.mubr.f32.mxu0 0.0
    %722 = vmatmul.mubr.f32.gmra.mrb[0].mxu0 %v655
    %v723 = vpop.f32.mrb[0].mxu0
    %v724 = vadd.f32 0.0, %v723
    %v725 = vpop.f32.mrb[0].mxu0
    %726 = vdwg.mxu0
    %v727 = vadd.f32 %v654, %v724
    %v728 = vxor.u32 %v727, 2147483648
    %v729 = vmul.f32 %v728, 1.442695
    %v730 = vpow.pop %v729
    %v731 = vadd.f32 %v730, 1.0
    %v732 = vrcp.pop %v731
    %v733 = vmul.f32 1.0, %v732
    %v734 = vmul.f32 %v733, %v640
    %736 = vrot.lane.b32.xlu0 %v733, 64
    %v737 = vpop.permute.xlu0 %736
    %v739 = vmul.f32 %v733, %v737
    %741 = vrot.lane.b32.xlu0 %v739, 96
    %v742 = vpop.permute.xlu0 %741
    %v744 = vadd.f32 %v734, %v742
    %v745 = vtanh.pop %v744
    %747 = vrot.lane.b32.xlu0 %v745, 64
    %v748 = vpop.permute.xlu0 %747
    %v750 = vmul.f32 %v733, %v748
    %752 = vrot.lane.b32.xlu0 %v750, 64
    %v753 = vpop.permute.xlu0 %752
    %s755 = scalar_lea.vmem %s2, 48
    %756 = vst.msk [vmem:[%s755] sm:$0xff] %vm30, %v753
    %s757 = scalar_lea.vmem %s0, 56
    %v758 = vld [vmem:[%s757] sm:$0xff]
    %v759 = vsel %vm30, %v753, 0
    %761 = vmatprep.subr.mxu0 0.0
    %762 = vmatpush1.msra.mxu0 %v23
    %763 = vmatprep.subr.mxu0 0.0
    %764 = vmatpush1.msra.mxu0 %v24
    %765 = vmatprep.subr.mxu0 0.0
    %766 = vmatpush1.msra.mxu0 %v25
    %767 = vmatprep.subr.mxu0 0.0
    %768 = vmatpush1.msra.mxu0 %v26
    %769 = vmatprep.subr.mxu0 0.0
    %770 = vmatpush1.msra.mxu0 0.0
    %771 = vmatprep.subr.mxu0 0.0
    %772 = vmatpush1.msra.mxu0 0.0
    %773 = vmatprep.subr.mxu0 0.0
    %774 = vmatpush1.msra.mxu0 0.0
    %775 = vmatprep.subr.mxu0 0.0
    %776 = vmatpush1.msra.mxu0 0.0
    %777 = vmatprep.subr.mxu0 0.0
    %778 = vmatpush1.msra.mxu0 0.0
    %779 = vmatprep.subr.mxu0 0.0
    %780 = vmatpush1.msra.mxu0 0.0
    %781 = vmatprep.subr.mxu0 0.0
    %782 = vmatpush1.msra.mxu0 0.0
    %783 = vmatprep.subr.mxu0 0.0
    %784 = vmatpush1.msra.mxu0 0.0
    %785 = vmatprep.subr.mxu0 0.0
    %786 = vmatpush1.msra.mxu0 0.0
    %787 = vmatprep.subr.mxu0 0.0
    %788 = vmatpush1.msra.mxu0 0.0
    %789 = vmatprep.subr.mxu0 0.0
    %790 = vmatpush1.msra.mxu0 0.0
    %791 = vmatprep.subr.mxu0 0.0
    %792 = vmatpush1.msra.mxu0 0.0
    %793 = vmatprep.subr.mxu0 0.0
    %794 = vmatpush1.msra.mxu0 0.0
    %795 = vmatprep.subr.mxu0 0.0
    %796 = vmatpush1.msra.mxu0 0.0
    %797 = vmatprep.subr.mxu0 0.0
    %798 = vmatpush1.msra.mxu0 0.0
    %799 = vmatprep.subr.mxu0 0.0
    %800 = vmatpush1.msra.mxu0 0.0
    %801 = vmatprep.subr.mxu0 0.0
    %802 = vmatpush1.msra.mxu0 0.0
    %803 = vmatprep.subr.mxu0 0.0
    %804 = vmatpush1.msra.mxu0 0.0
    %805 = vmatprep.subr.mxu0 0.0
    %806 = vmatpush1.msra.mxu0 0.0
    %807 = vmatprep.subr.mxu0 0.0
    %808 = vmatpush1.msra.mxu0 0.0
    %809 = vmatprep.subr.mxu0 0.0
    %810 = vmatpush1.msra.mxu0 0.0
    %811 = vmatprep.subr.mxu0 0.0
    %812 = vmatpush1.msra.mxu0 0.0
    %813 = vmatprep.subr.mxu0 0.0
    %814 = vmatpush1.msra.mxu0 0.0
    %815 = vmatprep.subr.mxu0 0.0
    %816 = vmatpush1.msra.mxu0 0.0
    %817 = vmatprep.subr.mxu0 0.0
    %818 = vmatpush1.msra.mxu0 0.0
    %819 = vmatprep.subr.mxu0 0.0
    %820 = vmatpush1.msra.mxu0 0.0
    %821 = vmatprep.subr.mxu0 0.0
    %822 = vmatpush1.msra.mxu0 0.0
    %823 = vmatprep.subr.mxu0 0.0
    %824 = vmatpush1.msra.mxu0 0.0
    %825 = vmatprep.mubr.f32.mxu0 0.0
    %826 = vmatmul.mubr.f32.gmra.mrb[0].mxu0 %v759
    %v827 = vpop.f32.mrb[0].mxu0
    %v828 = vadd.f32 0.0, %v827
    %v829 = vpop.f32.mrb[0].mxu0
    %830 = vdwg.mxu0
    %v831 = vadd.f32 %v758, %v828
    %v832 = vxor.u32 %v831, 2147483648
    %v833 = vmul.f32 %v832, 1.442695
    %v834 = vpow.pop %v833
    %v835 = vadd.f32 %v834, 1.0
    %v836 = vrcp.pop %v835
    %v837 = vmul.f32 1.0, %v836
    %v838 = vmul.f32 %v837, %v744
    %840 = vrot.lane.b32.xlu0 %v837, 64
    %v841 = vpop.permute.xlu0 %840
    %v843 = vmul.f32 %v837, %v841
    %845 = vrot.lane.b32.xlu0 %v843, 96
    %v846 = vpop.permute.xlu0 %845
    %v848 = vadd.f32 %v838, %v846
    %v849 = vtanh.pop %v848
    %851 = vrot.lane.b32.xlu0 %v849, 64
    %v852 = vpop.permute.xlu0 %851
    %v854 = vmul.f32 %v837, %v852
    %856 = vrot.lane.b32.xlu0 %v854, 64
    %v857 = vpop.permute.xlu0 %856
    %s859 = scalar_lea.vmem %s2, 56
    %860 = vst.msk [vmem:[%s859] sm:$0xff] %vm30, %v857
    %861 = vst.msk [vmem:[#allocation2] sm:$0xff] %vm30, %v857
    %862 = vst.msk [vmem:[#allocation3] sm:$0xff] %vm30, %v848
    // Predicated region
    $region14: #{lstm_forward.1} parent=1 // pred_check
      %p863 = pneg %p16
    $region15: #{lstm_forward.1} parent=1 // pred_check_branch
      %865 = sbr.rel (%p863) target = $region17
    $region16: #{lstm_forward.1} parent=1 // pred_region
      %866 = vst.msk [vmem:[#allocation4] sm:$0xff] %vm30, %v857
      %867 = vst.msk [vmem:[#allocation6] sm:$0xff] %vm30, %v848
    $region17: #{lstm_forward.1} parent=1 // pred_fallthru
      _
    // Predicated region
    $region18: #{lstm_forward.1} parent=1 // pred_check
      _
    $region19: #{lstm_forward.1} parent=1 // pred_check_branch
      %869 = sbr.rel (0) target = $region21
    $region20: #{lstm_forward.1} parent=1 // pred_region
      _
    $region21: #{lstm_forward.1} parent=1 // pred_fallthru
      _
    // Predicated region
    $region22: #{lstm_forward.1} parent=1 // pred_check
      _
    $region23: #{lstm_forward.1} parent=1 // pred_check_branch
      %871 = sbr.rel (0) target = $region25
    $region24: #{lstm_forward.1} parent=1 // pred_region
      %s873 = ssub.s32 128, 128
      %874 = vsyncadd [#allocation5], %s873
      %s876 = sshll.u32 [#allocation4], 4
      %s877 = int_to_ptr.vmem [resolvable:$true] %s876
      %879 = dma.vmem_to_hbm [thread:$0]  %s877, 128, %s3, [#allocation5]
    $region25: #{lstm_forward.1} parent=1 // pred_fallthru
      _
    // Predicated region
    $region26: #{lstm_forward.1} parent=1 // pred_check
      _
    $region27: #{lstm_forward.1} parent=1 // pred_check_branch
      %881 = sbr.rel (0) target = $region29
    $region28: #{lstm_forward.1} parent=1 // pred_region
      %s883 = ssub.s32 128, 128
      %884 = vsyncadd [#allocation7], %s883
      %s886 = sshll.u32 [#allocation6], 4
      %s887 = int_to_ptr.vmem [resolvable:$true] %s886
      %889 = dma.vmem_to_hbm [thread:$0]  %s887, 128, %s4, [#allocation7]
    $region29: #{lstm_forward.1} parent=1 // pred_fallthru
      _
    // Predicated region
    $region30: #{lstm_forward.1} parent=1 // pred_check
      _
    $region31: #{lstm_forward.1} parent=1 // pred_check_branch
      %891 = sbr.rel (0) target = $region33
    $region32: #{lstm_forward.1} parent=1 // pred_region
      _
    $region33: #{lstm_forward.1} parent=1 // pred_fallthru
      _
    // Predicated region
    $region34: #{lstm_forward.1} parent=1 // pred_check
      _
    $region35: #{lstm_forward.1} parent=1 // pred_check_branch
      %893 = sbr.rel (0) target = $region37
    $region36: #{lstm_forward.1} parent=1 // pred_region
      %894 = dma.done [#allocation5], 128
    $region37: #{lstm_forward.1} parent=1 // pred_fallthru
      _
    // Predicated region
    $region38: #{lstm_forward.1} parent=1 // pred_check
      _
    $region39: #{lstm_forward.1} parent=1 // pred_check_branch
      %896 = sbr.rel (0) target = $region41
    $region40: #{lstm_forward.1} parent=1 // pred_region
      %897 = dma.done [#allocation7], 128
    $region41: #{lstm_forward.1} parent=1 // pred_fallthru
      _
    %898 = vsyncpa [#allocation5], 1
    %899 = vsyncpa [#allocation7], 1

</llo_original>
